<compile_context>
chip_gen: v6e
topology: v6e:2x2x1
jax: 0.10.0
libtpu: 0.0.40
codegen_flags: <defaults>
</compile_context>

<pallas_src>
import functools

import jax
import jax.numpy as jnp
from jax.experimental import pallas as pl
from jax.experimental.pallas import tpu as pltpu

_LANE = 128
_SUB = 8
_MOM = 5  # Sx, Sy, Sxx, Syy, Sxy
_TARGET_TILE_BYTES = 2 * 1024 * 1024  # per input, per grid step


def _plcc_moments_kernel(pred_ref, target_ref, mom_ref, *,
                         rows, tile_rows, chunk, num_tiles, tiles_per_core):
    c = pl.program_id(0)            # core slot ("parallel" axis)
    t = pl.program_id(1)            # row-tile within this core's range ("arbitrary")
    gt = c * tiles_per_core + t     # global (unclamped) row-tile index

    @pl.when(t == 0)
    def _init():
        mom_ref[...] = jnp.zeros_like(mom_ref)

    n_chunks = tile_rows // chunk

    def _accumulate(valid_rows):
        # One fused sweep over the tile: each (chunk, 128) slab of both inputs
        # is read from VMEM exactly once and all five raw-moment accumulators
        # are updated (accumulators stay in vregs as fori_loop carries).
        def body(i, carry):
            sx, sy, sxx, syy, sxy = carry
            r0 = pl.multiple_of(i * chunk, chunk)
            xb = pred_ref[pl.ds(r0, chunk), :].astype(jnp.float32)
            yb = target_ref[pl.ds(r0, chunk), :].astype(jnp.float32)
            if valid_rows is not None:
                row = i * chunk + jax.lax.broadcasted_iota(
                    jnp.int32, (chunk, _LANE), 0)
                keep = row < valid_rows
                # Select (not multiply): out-of-bounds block rows are
                # undefined and may contain NaN/Inf.
                xb = jnp.where(keep, xb, 0.0)
                yb = jnp.where(keep, yb, 0.0)
            x3 = xb.reshape(-1, _SUB, _LANE)
            y3 = yb.reshape(-1, _SUB, _LANE)
            return (sx + jnp.sum(x3, axis=0),
                    sy + jnp.sum(y3, axis=0),
                    sxx + jnp.sum(x3 * x3, axis=0),
                    syy + jnp.sum(y3 * y3, axis=0),
                    sxy + jnp.sum(x3 * y3, axis=0))

        zeros = jnp.zeros((_SUB, _LANE), jnp.float32)
        unroll = 4 if n_chunks % 4 == 0 else 1
        sx, sy, sxx, syy, sxy = jax.lax.fori_loop(
            0, n_chunks, body, (zeros,) * _MOM, unroll=unroll)

        mom_ref[0, 0 * _SUB:1 * _SUB, :] += sx
        mom_ref[0, 1 * _SUB:2 * _SUB, :] += sy
        mom_ref[0, 2 * _SUB:3 * _SUB, :] += sxx
        mom_ref[0, 3 * _SUB:4 * _SUB, :] += syy
        mom_ref[0, 4 * _SUB:5 * _SUB, :] += sxy

    # Hot path: interior tiles are fully valid -> no masking cost.
    @pl.when(gt < num_tiles - 1)
    def _interior():
        _accumulate(None)

    # Tail path: the globally-last tile may be ragged; when num_tiles is odd
    # the second core slot also lands here with valid_rows <= 0 (its index_map
    # is clamped in-bounds and its contribution is fully masked to zero).
    @pl.when(gt >= num_tiles - 1)
    def _tail():
        _accumulate(rows - gt * tile_rows)


def _plcc_loss_ref(pred, target):
    """Pure-JAX reference (also used as the small-input fast path)."""
    x = jnp.ravel(pred).astype(jnp.float32)
    y = jnp.ravel(target).astype(jnp.float32)
    xm = x - jnp.mean(x)
    ym = y - jnp.mean(y)
    normxm = jnp.linalg.norm(xm) + 1e-8
    normym = jnp.linalg.norm(ym) + 1e-8
    r = jnp.dot(xm / normxm, ym / normym)
    return jnp.log(1.0 - r)


def plcc_loss(pred, target, *, tile_rows=None, min_pallas_elems=65536):
    """Pallas TPU implementation of PlccLoss.forward.

    pred/target: arrays of identical total size (any shape, any float dtype);
    flattened like torch's .view(-1).float().
    """
    pred_flat = jnp.ravel(pred)
    target_flat = jnp.ravel(target)
    n = pred_flat.shape[0]
    if n != target_flat.shape[0]:
        raise ValueError("input and target must have the same length")
    if n < 2:
        raise ValueError("input length must greater than 2")

    # Tiny inputs: launch + per-step overhead would dominate; a single fused
    # XLA reduction is faster and avoids any padding/reshape.
    if n < min_pallas_elems:
        return _plcc_loss_ref(pred_flat, target_flat)

    rows = -(-n // _LANE)

    # Row-tile size: ~2 MiB of input bytes per input per grid step (4096 rows
    # f32 / 8192 rows bf16), shrunk for small inputs.  2 inputs x 2 pipeline
    # buffers x 2 MiB = 8 MiB -> fits scoped VMEM on v5e/v6e/v7x.
    itemsize = max(pred_flat.dtype.itemsize, target_flat.dtype.itemsize)
    if tile_rows is None:
        tile_rows = _TARGET_TILE_BYTES // (_LANE * itemsize)
    tr = min(int(tile_rows), -(-rows // _SUB) * _SUB)
    tr = max(_SUB, (tr // _SUB) * _SUB)
    chunk = 32 if tr % 32 == 0 else _SUB

    num_tiles = -(-rows // tr)
    tiles_per_core = -(-num_tiles // 2)

    # Only a <128-element zero pad when N is not lane aligned (zeros add 0 to
    # every raw moment; the true n is used in the finalize).  No O(N) padding
    # to a tile multiple: the ragged last row-tile is masked inside the kernel.
    lane_pad = rows * _LANE - n
    if lane_pad:
        pred_flat = jnp.pad(pred_flat, (0, lane_pad))
        target_flat = jnp.pad(target_flat, (0, lane_pad))
    pred2d = pred_flat.reshape(rows, _LANE)
    target2d = target_flat.reshape(rows, _LANE)

    kernel = functools.partial(
        _plcc_moments_kernel, rows=rows, tile_rows=tr, chunk=chunk,
        num_tiles=num_tiles, tiles_per_core=tiles_per_core)

    def _tile_index(c, t):
        # Clamp the (at most one) out-of-range tile the second core slot sees
        # when num_tiles is odd; its contribution is fully masked in-kernel.
        return (jnp.minimum(c * tiles_per_core + t, num_tiles - 1), 0)

    moments = pl.pallas_call(
        kernel,
        out_shape=jax.ShapeDtypeStruct((2, _MOM * _SUB, _LANE), jnp.float32),
        grid_spec=pltpu.PrefetchScalarGridSpec(
            num_scalar_prefetch=0,
            grid=(2, tiles_per_core),
            in_specs=[
                pl.BlockSpec((tr, _LANE), _tile_index),
                pl.BlockSpec((tr, _LANE), _tile_index),
            ],
            out_specs=pl.BlockSpec((1, _MOM * _SUB, _LANE),
                                   lambda c, t: (c, 0, 0)),
        ),
        compiler_params=pltpu.CompilerParams(
            dimension_semantics=("parallel", "arbitrary"),
            vmem_limit_bytes=32 * 1024 * 1024,
        ),
    )(pred2d, target2d)

    # Trivial scalar finalize in plain JAX (a few dozen flops).
    m = moments.reshape(2, _MOM, _SUB, _LANE).sum(axis=(0, 2, 3))
    sx, sy, sxx, syy, sxy = m[0], m[1], m[2], m[3], m[4]
    inv_n = jnp.float32(1.0 / n)
    # TODO(synk): the raw-moment form (Sxx - Sx^2/n) cancels badly when
    # |mean| >> std; a per-tile centered / compensated pass would be more robust.
    xm2 = jnp.maximum(sxx - sx * sx * inv_n, 0.0)
    ym2 = jnp.maximum(syy - sy * sy * inv_n, 0.0)
    cov = sxy - sx * sy * inv_n
    normx = jnp.sqrt(xm2) + jnp.float32(1e-8)
    normy = jnp.sqrt(ym2) + jnp.float32(1e-8)
    r = cov / (normx * normy)
    # Guard: rounding can push r slightly past 1 for (near-)perfectly correlated
    # data; floor 1 - r at a tiny positive value so log() never sees <= 0 -> NaN.
    return jnp.log(jnp.maximum(jnp.float32(1.0) - r, jnp.float32(1e-30)))


if __name__ == "__main__":
    key = jax.random.PRNGKey(0)
    k1, k2, k3, k4 = jax.random.split(key, 4)

    def check(x, y, **kw):
        out = plcc_loss(x, y, min_pallas_elems=0, **kw)   # force the Pallas path
        jax.block_until_ready(out)
        ref = _plcc_loss_ref(x, y)
        assert jnp.isfinite(out), out
        assert jnp.allclose(out, ref, atol=5e-5, rtol=5e-5), (out, ref, kw)

    # 1) Typical small batch of per-image score maps: N = 2*4*16*16 = 2048
    #    (lane aligned -> zero-copy reshape), single row-tile.
    x = jax.random.normal(k1, (2, 4, 16, 16), dtype=jnp.float32)
    y = 0.5 * x + 0.5 * jax.random.normal(k2, (2, 4, 16, 16), dtype=jnp.float32)
    check(x, y)

    # 2) Force a multi-tile grid (2 row-tiles split across the 2 core slots)
    #    to exercise cross-step accumulation and the tail path.
    check(x, y, tile_rows=8)

    # 3) Ragged N (3*5*17*11 = 2805, not a multiple of 128): exercises the
    #    in-kernel iota/where row mask and the clamped duplicate tile.
    xr = jax.random.normal(k3, (3, 5, 17, 11), dtype=jnp.float32)
    yr = 0.3 * xr + jax.random.normal(k4, (3, 5, 17, 11), dtype=jnp.float32)
    check(xr, yr)
    check(xr, yr, tile_rows=8)

    # 4) bf16 inputs streamed in their native dtype and upcast in-kernel.
    check(x.astype(jnp.bfloat16), y.astype(jnp.bfloat16))

    print("KERNEL_OK")
</pallas_src>

<mosaic_0001>
module attributes {stable_mosaic.version = 11 : i64} {
  func.func @_plcc_moments_kernel(%arg0: i32, %arg1: i32, %arg2: memref<16x128xf32, #tpu.memory_space<vmem>>, %arg3: memref<16x128xf32, #tpu.memory_space<vmem>>, %arg4: memref<1x40x128xf32, #tpu.memory_space<vmem>>) attributes {dimension_semantics = [#tpu.dimension_semantics<parallel>, #tpu.dimension_semantics<arbitrary>], iteration_bounds = array<i64: 2, 1>, scalar_prefetch = 0 : i64, scratch_operands = 0 : i64, tpu.core_type = #tpu.core_type<tc>, window_params = [{transform_indices = @transform_0, window_bounds = array<i64: 16, 128>}, {transform_indices = @transform_1, window_bounds = array<i64: 16, 128>}, {transform_indices = @transform_2, window_bounds = array<i64: 1, 40, 128>}]} {
    %c1_i32 = arith.constant 1 : i32
    %0 = arith.muli %arg0, %c1_i32 : i32
    %1 = arith.addi %0, %arg1 : i32
    %c0_i32 = arith.constant 0 : i32
    %2 = arith.cmpi eq, %arg1, %c0_i32 : i32
    %3 = arith.extui %2 : i1 to i32
    %c0_i32_0 = arith.constant 0 : i32
    %4 = arith.cmpi ne, %3, %c0_i32_0 : i32
    scf.if %4 {
      %cst = arith.constant 0.000000e+00 : f32
      %11 = vector.broadcast %cst : f32 to vector<1x40x128xf32>
      %c0 = arith.constant 0 : index
      %c0_5 = arith.constant 0 : index
      %c0_6 = arith.constant 0 : index
      %12 = vector.load %arg4[%c0, %c0_5, %c0_6] : memref<1x40x128xf32, #tpu.memory_space<vmem>>, vector<1x40x128xf32>
      tpu.vector_store %arg4[%c0, %c0_5, %c0_6], %11 {strides = array<i32>} : memref<1x40x128xf32, #tpu.memory_space<vmem>>, vector<1x40x128xf32>,
    } else {
    }
    %c0_i32_1 = arith.constant 0 : i32
    %5 = arith.cmpi slt, %1, %c0_i32_1 : i32
    %6 = arith.extui %5 : i1 to i32
    %c0_i32_2 = arith.constant 0 : i32
    %7 = arith.cmpi ne, %6, %c0_i32_2 : i32
    scf.if %7 {
      %cst = arith.constant 0.000000e+00 : f32
      %11 = vector.broadcast %cst : f32 to vector<8x128xf32>
      %c0_i32_5 = arith.constant 0 : i32
      %c2_i32 = arith.constant 2 : i32
      %12 = arith.addi %c0_i32_5, %c2_i32 : i32
      %c1_i32_6 = arith.constant 1 : i32
      %13:5 = scf.for %arg5 = %c0_i32_5 to %12 step %c1_i32_6 iter_args(%arg6 = %11, %arg7 = %11, %arg8 = %11, %arg9 = %11, %arg10 = %11) -> (vector<8x128xf32>, vector<8x128xf32>, vector<8x128xf32>, vector<8x128xf32>, vector<8x128xf32>)  : i32 {
        %c8_i32 = arith.constant 8 : i32
        %44 = arith.muli %arg5, %c8_i32 : i32
        %45 = tpu.assume_multiple %44, 8 : i32
        %46 = arith.index_cast %45 : i32 to index
        %c0_33 = arith.constant 0 : index
        %47 = vector.load %arg2[%46, %c0_33] : memref<16x128xf32, #tpu.memory_space<vmem>>, vector<8x128xf32>
        %48 = arith.index_cast %45 : i32 to index
        %c0_34 = arith.constant 0 : index
        %49 = vector.load %arg3[%48, %c0_34] : memref<16x128xf32, #tpu.memory_space<vmem>>, vector<8x128xf32>
        %50 = vector.shape_cast %47 : vector<8x128xf32> to vector<1x8x128xf32>
        %51 = vector.shape_cast %49 : vector<8x128xf32> to vector<1x8x128xf32>
        %cst_35 = arith.constant dense<0.000000e+00> : vector<8x128xf32>
        %52 = vector.multi_reduction <add>, %50, %cst_35 [0] : vector<1x8x128xf32> to vector<8x128xf32>
        %53 = arith.addf %arg6, %52 : vector<8x128xf32>
        %cst_36 = arith.constant dense<0.000000e+00> : vector<8x128xf32>
        %54 = vector.multi_reduction <add>, %51, %cst_36 [0] : vector<1x8x128xf32> to vector<8x128xf32>
        %55 = arith.addf %arg7, %54 : vector<8x128xf32>
        %56 = arith.mulf %50, %50 : vector<1x8x128xf32>
        %cst_37 = arith.constant dense<0.000000e+00> : vector<8x128xf32>
        %57 = vector.multi_reduction <add>, %56, %cst_37 [0] : vector<1x8x128xf32> to vector<8x128xf32>
        %58 = arith.addf %arg8, %57 : vector<8x128xf32>
        %59 = arith.mulf %51, %51 : vector<1x8x128xf32>
        %cst_38 = arith.constant dense<0.000000e+00> : vector<8x128xf32>
        %60 = vector.multi_reduction <add>, %59, %cst_38 [0] : vector<1x8x128xf32> to vector<8x128xf32>
        %61 = arith.addf %arg9, %60 : vector<8x128xf32>
        %62 = arith.mulf %50, %51 : vector<1x8x128xf32>
        %cst_39 = arith.constant dense<0.000000e+00> : vector<8x128xf32>
        %63 = vector.multi_reduction <add>, %62, %cst_39 [0] : vector<1x8x128xf32> to vector<8x128xf32>
        %64 = arith.addf %arg10, %63 : vector<8x128xf32>
        scf.yield %53, %55, %58, %61, %64 : vector<8x128xf32>, vector<8x128xf32>, vector<8x128xf32>, vector<8x128xf32>, vector<8x128xf32>
      }
      %c2_i32_7 = arith.constant 2 : i32
      %c0 = arith.constant 0 : index
      %c0_8 = arith.constant 0 : index
      %c0_9 = arith.constant 0 : index
      %14 = vector.load %arg4[%c0, %c0_8, %c0_9] : memref<1x40x128xf32, #tpu.memory_space<vmem>>, vector<1x8x128xf32>
      %15 = vector.shape_cast %14 : vector<1x8x128xf32> to vector<8x128xf32>
      %16 = arith.addf %15, %13#0 : vector<8x128xf32>
      %c0_10 = arith.constant 0 : index
      %c0_11 = arith.constant 0 : index
      %c0_12 = arith.constant 0 : index
      %17 = vector.load %arg4[%c0_10, %c0_11, %c0_12] : memref<1x40x128xf32, #tpu.memory_space<vmem>>, vector<1x8x128xf32>
      %18 = vector.shape_cast %17 : vector<1x8x128xf32> to vector<8x128xf32>
      %19 = vector.shape_cast %16 : vector<8x128xf32> to vector<1x8x128xf32>
      tpu.vector_store %arg4[%c0_10, %c0_11, %c0_12], %19 {strides = array<i32>} : memref<1x40x128xf32, #tpu.memory_space<vmem>>, vector<1x8x128xf32>,
      %c0_13 = arith.constant 0 : index
      %c8 = arith.constant 8 : index
      %c0_14 = arith.constant 0 : index
      %20 = vector.load %arg4[%c0_13, %c8, %c0_14] : memref<1x40x128xf32, #tpu.memory_space<vmem>>, vector<1x8x128xf32>
      %21 = vector.shape_cast %20 : vector<1x8x128xf32> to vector<8x128xf32>
      %22 = arith.addf %21, %13#1 : vector<8x128xf32>
      %c0_15 = arith.constant 0 : index
      %c8_16 = arith.constant 8 : index
      %c0_17 = arith.constant 0 : index
      %23 = vector.load %arg4[%c0_15, %c8_16, %c0_17] : memref<1x40x128xf32, #tpu.memory_space<vmem>>, vector<1x8x128xf32>
      %24 = vector.shape_cast %23 : vector<1x8x128xf32> to vector<8x128xf32>
      %25 = vector.shape_cast %22 : vector<8x128xf32> to vector<1x8x128xf32>
      tpu.vector_store %arg4[%c0_15, %c8_16, %c0_17], %25 {strides = array<i32>} : memref<1x40x128xf32, #tpu.memory_space<vmem>>, vector<1x8x128xf32>,
      %c0_18 = arith.constant 0 : index
      %c16 = arith.constant 16 : index
      %c0_19 = arith.constant 0 : index
      %26 = vector.load %arg4[%c0_18, %c16, %c0_19] : memref<1x40x128xf32, #tpu.memory_space<vmem>>, vector<1x8x128xf32>
      %27 = vector.shape_cast %26 : vector<1x8x128xf32> to vector<8x128xf32>
      %28 = arith.addf %27, %13#2 : vector<8x128xf32>
      %c0_20 = arith.constant 0 : index
      %c16_21 = arith.constant 16 : index
      %c0_22 = arith.constant 0 : index
      %29 = vector.load %arg4[%c0_20, %c16_21, %c0_22] : memref<1x40x128xf32, #tpu.memory_space<vmem>>, vector<1x8x128xf32>
      %30 = vector.shape_cast %29 : vector<1x8x128xf32> to vector<8x128xf32>
      %31 = vector.shape_cast %28 : vector<8x128xf32> to vector<1x8x128xf32>
      tpu.vector_store %arg4[%c0_20, %c16_21, %c0_22], %31 {strides = array<i32>} : memref<1x40x128xf32, #tpu.memory_space<vmem>>, vector<1x8x128xf32>,
      %c0_23 = arith.constant 0 : index
      %c24 = arith.constant 24 : index
      %c0_24 = arith.constant 0 : index
      %32 = vector.load %arg4[%c0_23, %c24, %c0_24] : memref<1x40x128xf32, #tpu.memory_space<vmem>>, vector<1x8x128xf32>
      %33 = vector.shape_cast %32 : vector<1x8x128xf32> to vector<8x128xf32>
      %34 = arith.addf %33, %13#3 : vector<8x128xf32>
      %c0_25 = arith.constant 0 : index
      %c24_26 = arith.constant 24 : index
      %c0_27 = arith.constant 0 : index
      %35 = vector.load %arg4[%c0_25, %c24_26, %c0_27] : memref<1x40x128xf32, #tpu.memory_space<vmem>>, vector<1x8x128xf32>
      %36 = vector.shape_cast %35 : vector<1x8x128xf32> to vector<8x128xf32>
      %37 = vector.shape_cast %34 : vector<8x128xf32> to vector<1x8x128xf32>
      tpu.vector_store %arg4[%c0_25, %c24_26, %c0_27], %37 {strides = array<i32>} : memref<1x40x128xf32, #tpu.memory_space<vmem>>, vector<1x8x128xf32>,
      %c0_28 = arith.constant 0 : index
      %c32 = arith.constant 32 : index
      %c0_29 = arith.constant 0 : index
      %38 = vector.load %arg4[%c0_28, %c32, %c0_29] : memref<1x40x128xf32, #tpu.memory_space<vmem>>, vector<1x8x128xf32>
      %39 = vector.shape_cast %38 : vector<1x8x128xf32> to vector<8x128xf32>
      %40 = arith.addf %39, %13#4 : vector<8x128xf32>
      %c0_30 = arith.constant 0 : index
      %c32_31 = arith.constant 32 : index
      %c0_32 = arith.constant 0 : index
      %41 = vector.load %arg4[%c0_30, %c32_31, %c0_32] : memref<1x40x128xf32, #tpu.memory_space<vmem>>, vector<1x8x128xf32>
      %42 = vector.shape_cast %41 : vector<1x8x128xf32> to vector<8x128xf32>
      %43 = vector.shape_cast %40 : vector<8x128xf32> to vector<1x8x128xf32>
      tpu.vector_store %arg4[%c0_30, %c32_31, %c0_32], %43 {strides = array<i32>} : memref<1x40x128xf32, #tpu.memory_space<vmem>>, vector<1x8x128xf32>,
    } else {
    }
    %c0_i32_3 = arith.constant 0 : i32
    %8 = arith.cmpi sge, %1, %c0_i32_3 : i32
    %9 = arith.extui %8 : i1 to i32
    %c0_i32_4 = arith.constant 0 : i32
    %10 = arith.cmpi ne, %9, %c0_i32_4 : i32
    scf.if %10 {
      %c16_i32 = arith.constant 16 : i32
      %11 = arith.muli %1, %c16_i32 : i32
      %c16_i32_5 = arith.constant 16 : i32
      %12 = arith.subi %c16_i32_5, %11 : i32
      %cst = arith.constant 0.000000e+00 : f32
      %13 = vector.broadcast %cst : f32 to vector<8x128xf32>
      %c0_i32_6 = arith.constant 0 : i32
      %c2_i32 = arith.constant 2 : i32
      %14 = arith.addi %c0_i32_6, %c2_i32 : i32
      %c1_i32_7 = arith.constant 1 : i32
      %15:5 = scf.for %arg5 = %c0_i32_6 to %14 step %c1_i32_7 iter_args(%arg6 = %13, %arg7 = %13, %arg8 = %13, %arg9 = %13, %arg10 = %13) -> (vector<8x128xf32>, vector<8x128xf32>, vector<8x128xf32>, vector<8x128xf32>, vector<8x128xf32>)  : i32 {
        %c8_i32 = arith.constant 8 : i32
        %46 = arith.muli %arg5, %c8_i32 : i32
        %47 = tpu.assume_multiple %46, 8 : i32
        %48 = arith.index_cast %47 : i32 to index
        %c0_34 = arith.constant 0 : index
        %49 = vector.load %arg2[%48, %c0_34] : memref<16x128xf32, #tpu.memory_space<vmem>>, vector<8x128xf32>
        %50 = arith.index_cast %47 : i32 to index
        %c0_35 = arith.constant 0 : index
        %51 = vector.load %arg3[%50, %c0_35] : memref<16x128xf32, #tpu.memory_space<vmem>>, vector<8x128xf32>
        %c8_i32_36 = arith.constant 8 : i32
        %52 = arith.muli %arg5, %c8_i32_36 : i32
        %53 = tpu.iota {dimensions = array<i32: 0>} : vector<8x128xi32>
        %54 = vector.broadcast %52 : i32 to vector<8x128xi32>
        %55 = arith.addi %54, %53 : vector<8x128xi32>
        %56 = vector.broadcast %12 : i32 to vector<8x128xi32>
        %57 = arith.cmpi slt, %55, %56 : vector<8x128xi32>
        %cst_37 = arith.constant 0.000000e+00 : f32
        %58 = vector.broadcast %cst_37 : f32 to vector<8x128xf32>
        %59 = arith.select %57, %49, %58 : vector<8x128xi1>, vector<8x128xf32>
        %cst_38 = arith.constant 0.000000e+00 : f32
        %60 = vector.broadcast %cst_38 : f32 to vector<8x128xf32>
        %61 = arith.select %57, %51, %60 : vector<8x128xi1>, vector<8x128xf32>
        %62 = vector.shape_cast %59 : vector<8x128xf32> to vector<1x8x128xf32>
        %63 = vector.shape_cast %61 : vector<8x128xf32> to vector<1x8x128xf32>
        %cst_39 = arith.constant dense<0.000000e+00> : vector<8x128xf32>
        %64 = vector.multi_reduction <add>, %62, %cst_39 [0] : vector<1x8x128xf32> to vector<8x128xf32>
        %65 = arith.addf %arg6, %64 : vector<8x128xf32>
        %cst_40 = arith.constant dense<0.000000e+00> : vector<8x128xf32>
        %66 = vector.multi_reduction <add>, %63, %cst_40 [0] : vector<1x8x128xf32> to vector<8x128xf32>
        %67 = arith.addf %arg7, %66 : vector<8x128xf32>
        %68 = arith.mulf %62, %62 : vector<1x8x128xf32>
        %cst_41 = arith.constant dense<0.000000e+00> : vector<8x128xf32>
        %69 = vector.multi_reduction <add>, %68, %cst_41 [0] : vector<1x8x128xf32> to vector<8x128xf32>
        %70 = arith.addf %arg8, %69 : vector<8x128xf32>
        %71 = arith.mulf %63, %63 : vector<1x8x128xf32>
        %cst_42 = arith.constant dense<0.000000e+00> : vector<8x128xf32>
        %72 = vector.multi_reduction <add>, %71, %cst_42 [0] : vector<1x8x128xf32> to vector<8x128xf32>
        %73 = arith.addf %arg9, %72 : vector<8x128xf32>
        %74 = arith.mulf %62, %63 : vector<1x8x128xf32>
        %cst_43 = arith.constant dense<0.000000e+00> : vector<8x128xf32>
        %75 = vector.multi_reduction <add>, %74, %cst_43 [0] : vector<1x8x128xf32> to vector<8x128xf32>
        %76 = arith.addf %arg10, %75 : vector<8x128xf32>
        scf.yield %65, %67, %70, %73, %76 : vector<8x128xf32>, vector<8x128xf32>, vector<8x128xf32>, vector<8x128xf32>, vector<8x128xf32>
      }
      %c2_i32_8 = arith.constant 2 : i32
      %c0 = arith.constant 0 : index
      %c0_9 = arith.constant 0 : index
      %c0_10 = arith.constant 0 : index
      %16 = vector.load %arg4[%c0, %c0_9, %c0_10] : memref<1x40x128xf32, #tpu.memory_space<vmem>>, vector<1x8x128xf32>
      %17 = vector.shape_cast %16 : vector<1x8x128xf32> to vector<8x128xf32>
      %18 = arith.addf %17, %15#0 : vector<8x128xf32>
      %c0_11 = arith.constant 0 : index
      %c0_12 = arith.constant 0 : index
      %c0_13 = arith.constant 0 : index
      %19 = vector.load %arg4[%c0_11, %c0_12, %c0_13] : memref<1x40x128xf32, #tpu.memory_space<vmem>>, vector<1x8x128xf32>
      %20 = vector.shape_cast %19 : vector<1x8x128xf32> to vector<8x128xf32>
      %21 = vector.shape_cast %18 : vector<8x128xf32> to vector<1x8x128xf32>
      tpu.vector_store %arg4[%c0_11, %c0_12, %c0_13], %21 {strides = array<i32>} : memref<1x40x128xf32, #tpu.memory_space<vmem>>, vector<1x8x128xf32>,
      %c0_14 = arith.constant 0 : index
      %c8 = arith.constant 8 : index
      %c0_15 = arith.constant 0 : index
      %22 = vector.load %arg4[%c0_14, %c8, %c0_15] : memref<1x40x128xf32, #tpu.memory_space<vmem>>, vector<1x8x128xf32>
      %23 = vector.shape_cast %22 : vector<1x8x128xf32> to vector<8x128xf32>
      %24 = arith.addf %23, %15#1 : vector<8x128xf32>
      %c0_16 = arith.constant 0 : index
      %c8_17 = arith.constant 8 : index
      %c0_18 = arith.constant 0 : index
      %25 = vector.load %arg4[%c0_16, %c8_17, %c0_18] : memref<1x40x128xf32, #tpu.memory_space<vmem>>, vector<1x8x128xf32>
      %26 = vector.shape_cast %25 : vector<1x8x128xf32> to vector<8x128xf32>
      %27 = vector.shape_cast %24 : vector<8x128xf32> to vector<1x8x128xf32>
      tpu.vector_store %arg4[%c0_16, %c8_17, %c0_18], %27 {strides = array<i32>} : memref<1x40x128xf32, #tpu.memory_space<vmem>>, vector<1x8x128xf32>,
      %c0_19 = arith.constant 0 : index
      %c16 = arith.constant 16 : index
      %c0_20 = arith.constant 0 : index
      %28 = vector.load %arg4[%c0_19, %c16, %c0_20] : memref<1x40x128xf32, #tpu.memory_space<vmem>>, vector<1x8x128xf32>
      %29 = vector.shape_cast %28 : vector<1x8x128xf32> to vector<8x128xf32>
      %30 = arith.addf %29, %15#2 : vector<8x128xf32>
      %c0_21 = arith.constant 0 : index
      %c16_22 = arith.constant 16 : index
      %c0_23 = arith.constant 0 : index
      %31 = vector.load %arg4[%c0_21, %c16_22, %c0_23] : memref<1x40x128xf32, #tpu.memory_space<vmem>>, vector<1x8x128xf32>
      %32 = vector.shape_cast %31 : vector<1x8x128xf32> to vector<8x128xf32>
      %33 = vector.shape_cast %30 : vector<8x128xf32> to vector<1x8x128xf32>
      tpu.vector_store %arg4[%c0_21, %c16_22, %c0_23], %33 {strides = array<i32>} : memref<1x40x128xf32, #tpu.memory_space<vmem>>, vector<1x8x128xf32>,
      %c0_24 = arith.constant 0 : index
      %c24 = arith.constant 24 : index
      %c0_25 = arith.constant 0 : index
      %34 = vector.load %arg4[%c0_24, %c24, %c0_25] : memref<1x40x128xf32, #tpu.memory_space<vmem>>, vector<1x8x128xf32>
      %35 = vector.shape_cast %34 : vector<1x8x128xf32> to vector<8x128xf32>
      %36 = arith.addf %35, %15#3 : vector<8x128xf32>
      %c0_26 = arith.constant 0 : index
      %c24_27 = arith.constant 24 : index
      %c0_28 = arith.constant 0 : index
      %37 = vector.load %arg4[%c0_26, %c24_27, %c0_28] : memref<1x40x128xf32, #tpu.memory_space<vmem>>, vector<1x8x128xf32>
      %38 = vector.shape_cast %37 : vector<1x8x128xf32> to vector<8x128xf32>
      %39 = vector.shape_cast %36 : vector<8x128xf32> to vector<1x8x128xf32>
      tpu.vector_store %arg4[%c0_26, %c24_27, %c0_28], %39 {strides = array<i32>} : memref<1x40x128xf32, #tpu.memory_space<vmem>>, vector<1x8x128xf32>,
      %c0_29 = arith.constant 0 : index
      %c32 = arith.constant 32 : index
      %c0_30 = arith.constant 0 : index
      %40 = vector.load %arg4[%c0_29, %c32, %c0_30] : memref<1x40x128xf32, #tpu.memory_space<vmem>>, vector<1x8x128xf32>
      %41 = vector.shape_cast %40 : vector<1x8x128xf32> to vector<8x128xf32>
      %42 = arith.addf %41, %15#4 : vector<8x128xf32>
      %c0_31 = arith.constant 0 : index
      %c32_32 = arith.constant 32 : index
      %c0_33 = arith.constant 0 : index
      %43 = vector.load %arg4[%c0_31, %c32_32, %c0_33] : memref<1x40x128xf32, #tpu.memory_space<vmem>>, vector<1x8x128xf32>
      %44 = vector.shape_cast %43 : vector<1x8x128xf32> to vector<8x128xf32>
      %45 = vector.shape_cast %42 : vector<8x128xf32> to vector<1x8x128xf32>
      tpu.vector_store %arg4[%c0_31, %c32_32, %c0_33], %45 {strides = array<i32>} : memref<1x40x128xf32, #tpu.memory_space<vmem>>, vector<1x8x128xf32>,
    } else {
    }
    return
  }
  func.func @transform_0(%arg0: i32, %arg1: i32) -> (i32, i32) {
    %c1_i32 = arith.constant 1 : i32
    %0 = arith.muli %arg0, %c1_i32 : i32
    %1 = arith.addi %0, %arg1 : i32
    %c0_i32 = arith.constant 0 : i32
    %2 = arith.minsi %1, %c0_i32 : i32
    %c0_i32_0 = arith.constant 0 : i32
    %c0_i32_1 = arith.constant 0 : i32
    return %2, %c0_i32_0 : i32, i32
  }
  func.func @transform_1(%arg0: i32, %arg1: i32) -> (i32, i32) {
    %c1_i32 = arith.constant 1 : i32
    %0 = arith.muli %arg0, %c1_i32 : i32
    %1 = arith.addi %0, %arg1 : i32
    %c0_i32 = arith.constant 0 : i32
    %2 = arith.minsi %1, %c0_i32 : i32
    %c0_i32_0 = arith.constant 0 : i32
    %c0_i32_1 = arith.constant 0 : i32
    return %2, %c0_i32_0 : i32, i32
  }
  func.func @transform_2(%arg0: i32, %arg1: i32) -> (i32, i32, i32) {
    %c0_i32 = arith.constant 0 : i32
    %c0_i32_0 = arith.constant 0 : i32
    %c0_i32_1 = arith.constant 0 : i32
    return %arg0, %c0_i32, %c0_i32_0 : i32, i32, i32
  }
}

</mosaic_0001>

<llo_original>
// kernel: tpu_custom_call.1
$region0: #{tpu_custom_call.1}
  #allocation0 [shape = 'u32[]', space=smem, size = 0x4, offset = 0x4, fixed_abs, tag = 'smem constant byte address 0x4 - core index']
  #allocation1 [shape = 'u32[144,128]{1,0:T(1,128)}', space=vmem, size = 0x12000, scoped, tag = 'internal scratch']
  %s0 = inlined_call_operand.hbm [shape: f32[16,128], index: 0, kind: input, shape index: {}]
  %s1 = inlined_call_operand.hbm [shape: f32[16,128], index: 1, kind: input, shape index: {}]
  %s2 = inlined_call_operand.hbm [shape: f32[2,40,128], index: 2, kind: output, shape index: {}]
  %s3 = sld [smem:[#allocation0]]
  $region75: #{tpu_custom_call.1} parent=0
    _
  %s5 = ssub.s32 1, %s3
  %s6 = scalar_select 0, %s5, %s3
  $region1: #{tpu_custom_call.1} parent=0
    #allocation2 [shape = 'u8[16384]{0}', space=vmem, size = 0x4000, scoped, tag = 'input window, operand 0']
    #allocation3 [shape = 's32[2]{0}', space=sflag, size = 0x8, scoped, tag = 'scoped memory for tpu_custom_call.1']
    #allocation4 [shape = 's32[2]{0}', space=sflag, size = 0x8, scoped, tag = 'scoped memory for tpu_custom_call.1']
    #allocation5 [shape = 'u8[16384]{0}', space=vmem, size = 0x4000, scoped, tag = 'input window, operand 1']
    #allocation6 [shape = 's32[2]{0}', space=sflag, size = 0x8, scoped, tag = 'scoped memory for tpu_custom_call.1']
    #allocation7 [shape = 'u8[40960]{0}', space=vmem, size = 0xa000, scoped, tag = 'output window, operand 0']
    %7 = vsyncpa [#allocation3], 0
    %s8 = scalar_lea.sflag [#allocation3], 1
    %9 = vsyncpa %s8, 0
    %10 = vsyncpa [#allocation6], 0
    %s11 = scalar_lea.sflag [#allocation6], 1
    %12 = vsyncpa %s11, 0
    %13 = vsyncpa [#allocation4], 0
    %s14 = scalar_lea.sflag [#allocation4], 1
    %15 = vsyncpa %s14, 0
    loop: start=0, step=1, limit=4
    $region2: #{tpu_custom_call.1} parent=1 // loop_pre_header
      _
    $region3: #{tpu_custom_call.1} parent=1 // loop_header
      %s17 = sphi 0, %s21
      %p18 = scmp.ge.s32.totalorder %s17, 4
      %s24 = sphi 0, %s36
      %s25 = sphi 0, %s32
      %s26 = sphi 0, %s24
      %s27 = sphi 0, %s25
      %s28 = sphi 0, %s26
      %s29 = sphi 0, %s27
      %s45 = sphi 0, %s47
      %s48 = sphi 0, %s45
      %s49 = sphi 0, %s48
      %s65 = sphi 0, %s49
      %s77 = sphi 0, %s79
      %s80 = sphi 0, %s77
      %s81 = sphi 0, %s80
      %s97 = sphi 0, %s81
      %s103 = sphi 0, %s105
      %s106 = sphi 0, %s103
      %s107 = sphi 0, %s106
      %s123 = sphi 0, %s107
    $region4: #{tpu_custom_call.1} parent=1 // loop_header_branch
      %20 = sbr.rel (%p18) target = $region8
    $region5: #{tpu_custom_call.1} parent=1 // loop_body
      %s22 = ssub.s32 %s17, 1
      %s23 = ssub.s32 %s17, 2
      %s30 = sadd.s32 1, %s25
      %p31 = scmp.ge.s32.totalorder %s30, 1
      %s32 = scalar_select %p31, 0, %s30
      %s33 = sadd.s32 1, %s24
      %s34 = scalar_select %p31, %s33, %s24
      %p35 = scmp.ge.s32.totalorder %s34, 2
      %s36 = scalar_select %p35, 0, %s34
      %s37 = sadd.s32 %s24, %s25
      %p38 = scmp.lt.s32.totalorder %s37, 0
      %s39 = scalar_select %p38, %s37, 0
      %s40 = sadd.s32 %s36, %s32
      %p41 = scmp.lt.s32.totalorder %s40, 0
      %s42 = scalar_select %p41, %s40, 0
      %s43 = ssub.s32 %s39, %s42
      %p44 = scmp.eq.s32.totalorder %s43, 0
      %s46 = sadd.s32 %s45, 1
      %s47 = scalar_select %p44, %s45, %s46
      %p50 = pneg %p44
      %p51 = scmp.eq.s32.totalorder %s17, 1
      %p52 = por %p50, %p51
      %p53 = scmp.ne.s32.totalorder %s45, %s48
      %p54 = scmp.eq.s32.totalorder %s17, 0
      %p55 = por %p53, %p54
      %p56 = scmp.ne.s32.totalorder %s45, %s48
      %p57 = scmp.eq.s32.totalorder %s22, 1
      %p58 = por %p56, %p57
      %p59 = scmp.ne.s32.totalorder %s48, %s49
      %p60 = scmp.eq.s32.totalorder %s22, 0
      %p61 = por %p59, %p60
      %p62 = scmp.ne.s32.totalorder %s48, %s49
      %p63 = scmp.eq.s32.totalorder %s23, 1
      %p64 = por %p62, %p63
      %p66 = scmp.ne.s32.totalorder %s49, %s65
      %p67 = scmp.eq.s32.totalorder %s23, 0
      %p68 = por %p66, %p67
      %s69 = sadd.s32 %s24, %s25
      %p70 = scmp.lt.s32.totalorder %s69, 0
      %s71 = scalar_select %p70, %s69, 0
      %s72 = sadd.s32 %s36, %s32
      %p73 = scmp.lt.s32.totalorder %s72, 0
      %s74 = scalar_select %p73, %s72, 0
      %s75 = ssub.s32 %s71, %s74
      %p76 = scmp.eq.s32.totalorder %s75, 0
      %s78 = sadd.s32 %s77, 1
      %s79 = scalar_select %p76, %s77, %s78
      %p82 = pneg %p76
      %p83 = scmp.eq.s32.totalorder %s17, 1
      %p84 = por %p82, %p83
      %p85 = scmp.ne.s32.totalorder %s77, %s80
      %p86 = scmp.eq.s32.totalorder %s17, 0
      %p87 = por %p85, %p86
      %p88 = scmp.ne.s32.totalorder %s77, %s80
      %p89 = scmp.eq.s32.totalorder %s22, 1
      %p90 = por %p88, %p89
      %p91 = scmp.ne.s32.totalorder %s80, %s81
      %p92 = scmp.eq.s32.totalorder %s22, 0
      %p93 = por %p91, %p92
      %p94 = scmp.ne.s32.totalorder %s80, %s81
      %p95 = scmp.eq.s32.totalorder %s23, 1
      %p96 = por %p94, %p95
      %p98 = scmp.ne.s32.totalorder %s81, %s97
      %p99 = scmp.eq.s32.totalorder %s23, 0
      %p100 = por %p98, %p99
      %s101 = ssub.s32 %s24, %s36
      %p102 = scmp.eq.s32.totalorder %s101, 0
      %s104 = sadd.s32 %s103, 1
      %s105 = scalar_select %p102, %s103, %s104
      %p108 = pneg %p102
      %p109 = scmp.eq.s32.totalorder %s17, 1
      %p110 = por %p108, %p109
      %p111 = scmp.ne.s32.totalorder %s103, %s106
      %p112 = scmp.eq.s32.totalorder %s17, 0
      %p113 = por %p111, %p112
      %p114 = scmp.ne.s32.totalorder %s103, %s106
      %p115 = scmp.eq.s32.totalorder %s22, 1
      %p116 = por %p114, %p115
      %p117 = scmp.ne.s32.totalorder %s106, %s107
      %p118 = scmp.eq.s32.totalorder %s22, 0
      %p119 = por %p117, %p118
      %p120 = scmp.ne.s32.totalorder %s106, %s107
      %p121 = scmp.eq.s32.totalorder %s23, 1
      %p122 = por %p120, %p121
      %p124 = scmp.ne.s32.totalorder %s107, %s123
      %p125 = scmp.eq.s32.totalorder %s23, 0
      %p126 = por %p124, %p125
      %p127 = scmp.le.s32.totalorder 1, %s17
      %p128 = scmp.lt.s32.totalorder %s17, 3
      %p129 = pnand %p127, %p128
      %p130 = pneg %p129
      // Predicated region
      $region9: #{tpu_custom_call.1} parent=5 // pred_check
        _
      $region10: #{tpu_custom_call.1} parent=5 // pred_check_branch
        %132 = sbr.rel (%p129) target = $region12
      $region11: #{tpu_custom_call.1} parent=5 // pred_region
        %s133 = ssub.s32 %s17, 1
      $region12: #{tpu_custom_call.1} parent=5 // pred_fallthru
        _
      %p134 = scmp.lt.s32.totalorder %s17, 2
      // Predicated region
      $region13: #{tpu_custom_call.1} parent=5 // pred_check
        %p135 = pneg %p134
      $region14: #{tpu_custom_call.1} parent=5 // pred_check_branch
        %137 = sbr.rel (%p135) target = $region16
      $region15: #{tpu_custom_call.1} parent=5 // pred_region
        // Predicated region
        $region17: #{tpu_custom_call.1} parent=15 // pred_check
          %p138 = pneg %p55
        $region18: #{tpu_custom_call.1} parent=15 // pred_check_branch
          %140 = sbr.rel (%p138) target = $region20
        $region19: #{tpu_custom_call.1} parent=15 // pred_region
          %s141 = sand.u32 %s45, 1
          %s142 = scalar_lea.sflag [#allocation3], %s141
          %s143 = sand.u32 %s45, 1
          %s144 = smul.addr %s143, 16
          %s145 = scalar_lea.vmem [#allocation2], %s144
          %s146 = sadd.s32 %s24, %s25
          %p147 = scmp.lt.s32.totalorder %s146, 0
          %s148 = scalar_select %p147, %s146, 0
          %s149 = smul.u32 2, %s148
          %s151 = ssub.s32 256, 256
          %152 = vsyncadd %s142, %s151
          %s153 = smul.addr %s149, 128
          %s154 = scalar_lea.hbm %s0, %s153
          %s155 = sshll.u32 %s145, 4
          %s156 = int_to_ptr.vmem [resolvable:$true] %s155
          %161 = dma.hbm_to_vmem [thread:$0]  %s154, 256, %s156, %s142, 128, 128, 8
        $region20: #{tpu_custom_call.1} parent=15 // pred_fallthru
          _
        // Predicated region
        $region21: #{tpu_custom_call.1} parent=15 // pred_check
          %p162 = pneg %p87
        $region22: #{tpu_custom_call.1} parent=15 // pred_check_branch
          %164 = sbr.rel (%p162) target = $region24
        $region23: #{tpu_custom_call.1} parent=15 // pred_region
          %s165 = sand.u32 %s77, 1
          %s166 = scalar_lea.sflag [#allocation6], %s165
          %s167 = sand.u32 %s77, 1
          %s168 = smul.addr %s167, 16
          %s169 = scalar_lea.vmem [#allocation5], %s168
          %s170 = sadd.s32 %s24, %s25
          %p171 = scmp.lt.s32.totalorder %s170, 0
          %s172 = scalar_select %p171, %s170, 0
          %s173 = smul.u32 2, %s172
          %s175 = ssub.s32 256, 256
          %176 = vsyncadd %s166, %s175
          %s177 = smul.addr %s173, 128
          %s178 = scalar_lea.hbm %s1, %s177
          %s179 = sshll.u32 %s169, 4
          %s180 = int_to_ptr.vmem [resolvable:$true] %s179
          %185 = dma.hbm_to_vmem [thread:$0]  %s178, 256, %s180, %s166, 128, 128, 8
        $region24: #{tpu_custom_call.1} parent=15 // pred_fallthru
          _
      $region16: #{tpu_custom_call.1} parent=5 // pred_fallthru
        _
      %p186 = scmp.le.s32.totalorder 1, %s17
      %p187 = scmp.lt.s32.totalorder %s17, 3
      %p188 = pnand %p186, %p187
      %p189 = pneg %p188
      // Predicated region
      $region25: #{tpu_custom_call.1} parent=5 // pred_check
        _
      $region26: #{tpu_custom_call.1} parent=5 // pred_check_branch
        %191 = sbr.rel (%p188) target = $region28
      $region27: #{tpu_custom_call.1} parent=5 // pred_region
        %s192 = ssub.s32 %s17, 1
        %s193 = sand.u32 %s48, 1
        %s194 = scalar_lea.sflag [#allocation3], %s193
        %s195 = sand.u32 %s48, 1
        %s196 = smul.addr %s195, 16
        %s197 = scalar_lea.vmem [#allocation2], %s196
        // Predicated region
        $region29: #{tpu_custom_call.1} parent=27 // pred_check
          %p198 = pneg %p61
        $region30: #{tpu_custom_call.1} parent=27 // pred_check_branch
          %200 = sbr.rel (%p198) target = $region32
        $region31: #{tpu_custom_call.1} parent=27 // pred_region
          %201 = dma.done %s194, 256
        $region32: #{tpu_custom_call.1} parent=27 // pred_fallthru
          _
        %s202 = sand.u32 %s80, 1
        %s203 = scalar_lea.sflag [#allocation6], %s202
        %s204 = sand.u32 %s80, 1
        %s205 = smul.addr %s204, 16
        %s206 = scalar_lea.vmem [#allocation5], %s205
        // Predicated region
        $region33: #{tpu_custom_call.1} parent=27 // pred_check
          %p207 = pneg %p93
        $region34: #{tpu_custom_call.1} parent=27 // pred_check_branch
          %209 = sbr.rel (%p207) target = $region36
        $region35: #{tpu_custom_call.1} parent=27 // pred_region
          %210 = dma.done %s203, 256
        $region36: #{tpu_custom_call.1} parent=27 // pred_fallthru
          _
        %s211 = sand.u32 %s48, 1
        %s212 = scalar_lea.sflag [#allocation3], %s211
        %s213 = sand.u32 %s48, 1
        %s214 = smul.addr %s213, 16
        %s215 = scalar_lea.vmem [#allocation2], %s214
        %p216 = pneg %p61
        %p217 = pneg %p58
        %s218 = sand.u32 %s80, 1
        %s219 = scalar_lea.sflag [#allocation6], %s218
        %s220 = sand.u32 %s80, 1
        %s221 = smul.addr %s220, 16
        %s222 = scalar_lea.vmem [#allocation5], %s221
        %p223 = pneg %p93
        %p224 = pneg %p90
        %p225 = pneg %p119
        %p226 = pneg %p116
        %s227 = sand.u32 %s106, 1
        %s228 = scalar_lea.sflag [#allocation4], %s227
        %s229 = sand.u32 %s106, 1
        %s230 = smul.addr %s229, 40
        %s231 = scalar_lea.vmem [#allocation7], %s230
        %s232 = sadd.s32 %s26, %s27
        %p233 = scmp.lt.s32.totalorder %s232, 0
        %s234 = scalar_select %p233, %s232, 0
        %s235 = smul.u32 2, %s234
        %s236 = sadd.s32 %s26, %s27
        %p237 = scmp.lt.s32.totalorder %s236, 0
        %s238 = scalar_select %p237, %s236, 0
        %s239 = smul.u32 2, %s238
        %s240 = sadd.s32 %s26, %s27
        %p241 = scmp.eq.s32.totalorder %s27, 0
        // Predicated region
        $region37: #{tpu_custom_call.1} parent=27 // pred_check
          %p242 = pneg %p241
        $region38: #{tpu_custom_call.1} parent=27 // pred_check_branch
          %244 = sbr.rel (%p242) target = $region40
        $region39: #{tpu_custom_call.1} parent=27 // pred_region
          %245 = vst [vmem:[%s231] sm:$0xff] 0.0
          %246 = vst [vmem:[%s231 + $0x8] sm:$0xff] 0.0
          %247 = vst [vmem:[%s231 + $0x10] sm:$0xff] 0.0
          %248 = vst [vmem:[%s231 + $0x18] sm:$0xff] 0.0
          %249 = vst [vmem:[%s231 + $0x20] sm:$0xff] 0.0
        $region40: #{tpu_custom_call.1} parent=27 // pred_fallthru
          _
        %p250 = scmp.lt.s32.totalorder %s240, 0
        // Predicated region
        $region41: #{tpu_custom_call.1} parent=27 // pred_check
          %p251 = pneg %p250
        $region42: #{tpu_custom_call.1} parent=27 // pred_check_branch
          %253 = sbr.rel (%p251) target = $region44
        $region43: #{tpu_custom_call.1} parent=27 // pred_region
          loop: start=0, step=1, limit=2
          $region45: #{tpu_custom_call.1} parent=43 // loop_pre_header
            _
          $region46: #{tpu_custom_call.1} parent=43 // loop_header
            %s255 = sphi 0, %s259
            %p256 = scmp.ge.s32.totalorder %s255, 2
            %v260 = vphi 0.0, %v271
            %v261 = vphi 0.0, %v273
            %v262 = vphi 0.0, %v276
            %v263 = vphi 0.0, %v279
            %v264 = vphi 0.0, %v282
          $region47: #{tpu_custom_call.1} parent=43 // loop_header_branch
            %258 = sbr.rel (%p256) target = $region51
          $region48: #{tpu_custom_call.1} parent=43 // loop_body
            %s265 = smul.u32 %s255, 8
            %s266 = scalar_lea.vmem %s197, %s265 [#allocation2]
            %v267 = vld [vmem:[%s266] sm:$0xff]
            %s268 = scalar_lea.vmem %s206, %s265 [#allocation5]
            %v269 = vld [vmem:[%s268] sm:$0xff]
            %v270 = vadd.f32 %v267, 0.0
            %v271 = vadd.f32 %v260, %v270
            %v272 = vadd.f32 %v269, 0.0
            %v273 = vadd.f32 %v261, %v272
            %v274 = vmul.f32 %v267, %v267
            %v275 = vadd.f32 %v274, 0.0
            %v276 = vadd.f32 %v262, %v275
            %v277 = vmul.f32 %v269, %v269
            %v278 = vadd.f32 %v277, 0.0
            %v279 = vadd.f32 %v263, %v278
            %v280 = vmul.f32 %v267, %v269
            %v281 = vadd.f32 %v280, 0.0
            %v282 = vadd.f32 %v264, %v281
          $region49: #{tpu_custom_call.1} parent=43 // loop_footer
            %s259 = sadd.s32 1, %s255
          $region50: #{tpu_custom_call.1} parent=43 // loop_footer_branch
            %254 = sbr.rel target = $region46
          $region51: #{tpu_custom_call.1} parent=43 // loop_exit
            _
          %v283 = vld [vmem:[%s231] sm:$0xff]
          %v284 = vadd.f32 %v283, %v260
          %285 = vst [vmem:[%s231] sm:$0xff] %v284
          %v286 = vld [vmem:[%s231 + $0x8] sm:$0xff]
          %v287 = vadd.f32 %v286, %v261
          %288 = vst [vmem:[%s231 + $0x8] sm:$0xff] %v287
          %v289 = vld [vmem:[%s231 + $0x10] sm:$0xff]
          %v290 = vadd.f32 %v289, %v262
          %291 = vst [vmem:[%s231 + $0x10] sm:$0xff] %v290
          %v292 = vld [vmem:[%s231 + $0x18] sm:$0xff]
          %v293 = vadd.f32 %v292, %v263
          %294 = vst [vmem:[%s231 + $0x18] sm:$0xff] %v293
          %v295 = vld [vmem:[%s231 + $0x20] sm:$0xff]
          %v296 = vadd.f32 %v295, %v264
          %297 = vst [vmem:[%s231 + $0x20] sm:$0xff] %v296
        $region44: #{tpu_custom_call.1} parent=27 // pred_fallthru
          _
        %p298 = scmp.ge.s32.totalorder %s240, 0
        // Predicated region
        $region52: #{tpu_custom_call.1} parent=27 // pred_check
          %p299 = pneg %p298
        $region53: #{tpu_custom_call.1} parent=27 // pred_check_branch
          %301 = sbr.rel (%p299) target = $region55
        $region54: #{tpu_custom_call.1} parent=27 // pred_region
          %s302 = smul.u32 %s240, 16
          %s303 = ssub.s32 16, %s302
          loop: start=0, step=1, limit=2
          $region56: #{tpu_custom_call.1} parent=54 // loop_pre_header
            _
          $region57: #{tpu_custom_call.1} parent=54 // loop_header
            %s305 = sphi 0, %s309
            %p306 = scmp.ge.s32.totalorder %s305, 2
            %v310 = vphi 0.0, %v329
            %v311 = vphi 0.0, %v331
            %v312 = vphi 0.0, %v334
            %v313 = vphi 0.0, %v337
            %v314 = vphi 0.0, %v340
          $region58: #{tpu_custom_call.1} parent=54 // loop_header_branch
            %308 = sbr.rel (%p306) target = $region62
          $region59: #{tpu_custom_call.1} parent=54 // loop_body
            %s315 = smul.u32 %s305, 8
            %s316 = scalar_lea.vmem %s197, %s315 [#allocation2]
            %v317 = vld [vmem:[%s316] sm:$0xff]
            %s318 = scalar_lea.vmem %s206, %s315 [#allocation5]
            %v319 = vld [vmem:[%s318] sm:$0xff]
            %v320 = vlaneseq
            %v321 = vshrl.u32 %v320, 7
            %v322 = vstv %s315
            %v323 = vadd.s32 %v322, %v321
            %v324 = vstv %s303
            %vm325 = vcmp.lt.s32.totalorder %v323, %v324
            %v326 = vsel %vm325, %v317, 0.0
            %v327 = vsel %vm325, %v319, 0.0
            %v328 = vadd.f32 %v326, 0.0
            %v329 = vadd.f32 %v310, %v328
            %v330 = vadd.f32 %v327, 0.0
            %v331 = vadd.f32 %v311, %v330
            %v332 = vmul.f32 %v326, %v326
            %v333 = vadd.f32 %v332, 0.0
            %v334 = vadd.f32 %v312, %v333
            %v335 = vmul.f32 %v327, %v327
            %v336 = vadd.f32 %v335, 0.0
            %v337 = vadd.f32 %v313, %v336
            %v338 = vmul.f32 %v326, %v327
            %v339 = vadd.f32 %v338, 0.0
            %v340 = vadd.f32 %v314, %v339
          $region60: #{tpu_custom_call.1} parent=54 // loop_footer
            %s309 = sadd.s32 1, %s305
          $region61: #{tpu_custom_call.1} parent=54 // loop_footer_branch
            %304 = sbr.rel target = $region57
          $region62: #{tpu_custom_call.1} parent=54 // loop_exit
            _
          %v341 = vld [vmem:[%s231] sm:$0xff]
          %v342 = vadd.f32 %v341, %v310
          %343 = vst [vmem:[%s231] sm:$0xff] %v342
          %v344 = vld [vmem:[%s231 + $0x8] sm:$0xff]
          %v345 = vadd.f32 %v344, %v311
          %346 = vst [vmem:[%s231 + $0x8] sm:$0xff] %v345
          %v347 = vld [vmem:[%s231 + $0x10] sm:$0xff]
          %v348 = vadd.f32 %v347, %v312
          %349 = vst [vmem:[%s231 + $0x10] sm:$0xff] %v348
          %v350 = vld [vmem:[%s231 + $0x18] sm:$0xff]
          %v351 = vadd.f32 %v350, %v313
          %352 = vst [vmem:[%s231 + $0x18] sm:$0xff] %v351
          %v353 = vld [vmem:[%s231 + $0x20] sm:$0xff]
          %v354 = vadd.f32 %v353, %v314
          %355 = vst [vmem:[%s231 + $0x20] sm:$0xff] %v354
        $region55: #{tpu_custom_call.1} parent=27 // pred_fallthru
          _
        %s356 = sand.u32 %s106, 1
        %s357 = scalar_lea.sflag [#allocation4], %s356
        %s358 = sand.u32 %s106, 1
        %s359 = smul.addr %s358, 40
        %s360 = scalar_lea.vmem [#allocation7], %s359
        // Predicated region
        $region63: #{tpu_custom_call.1} parent=27 // pred_check
          %p361 = pneg %p116
        $region64: #{tpu_custom_call.1} parent=27 // pred_check_branch
          %363 = sbr.rel (%p361) target = $region66
        $region65: #{tpu_custom_call.1} parent=27 // pred_region
          %s365 = ssub.s32 640, 640
          %366 = vsyncadd %s357, %s365
          %s367 = smul.addr %s26, 5
          %s368 = smul.addr %s367, 128
          %s369 = scalar_lea.hbm %s2, %s368
          %s370 = sshll.u32 %s360, 4
          %s371 = int_to_ptr.vmem [resolvable:$true] %s370
          %376 = dma.vmem_to_hbm [thread:$0]  %s371, 640, %s369, %s357, 128, 128, 8
        $region66: #{tpu_custom_call.1} parent=27 // pred_fallthru
          _
      $region28: #{tpu_custom_call.1} parent=5 // pred_fallthru
        _
      %p377 = scmp.le.s32.totalorder 2, %s17
      // Predicated region
      $region67: #{tpu_custom_call.1} parent=5 // pred_check
        %p378 = pneg %p377
      $region68: #{tpu_custom_call.1} parent=5 // pred_check_branch
        %380 = sbr.rel (%p378) target = $region70
      $region69: #{tpu_custom_call.1} parent=5 // pred_region
        %s381 = ssub.s32 %s17, 2
        // Predicated region
        $region71: #{tpu_custom_call.1} parent=69 // pred_check
          %p382 = pneg %p122
        $region72: #{tpu_custom_call.1} parent=69 // pred_check_branch
          %384 = sbr.rel (%p382) target = $region74
        $region73: #{tpu_custom_call.1} parent=69 // pred_region
          %s385 = sand.u32 %s107, 1
          %s386 = scalar_lea.sflag [#allocation4], %s385
          %s387 = sand.u32 %s107, 1
          %s388 = smul.addr %s387, 40
          %s389 = scalar_lea.vmem [#allocation7], %s388
          %390 = dma.done %s386, 640
        $region74: #{tpu_custom_call.1} parent=69 // pred_fallthru
          _
      $region70: #{tpu_custom_call.1} parent=5 // pred_fallthru
        _
    $region6: #{tpu_custom_call.1} parent=1 // loop_footer
      %s21 = sadd.s32 1, %s17
    $region7: #{tpu_custom_call.1} parent=1 // loop_footer_branch
      %16 = sbr.rel target = $region3
    $region8: #{tpu_custom_call.1} parent=1 // loop_exit
      _
    %391 = vsyncpa [#allocation3], 1
    %s392 = scalar_lea.sflag [#allocation3], 1
    %393 = vsyncpa %s392, 1
    %394 = vsyncpa [#allocation6], 1
    %s395 = scalar_lea.sflag [#allocation6], 1
    %396 = vsyncpa %s395, 1
    %397 = vsyncpa [#allocation4], 1
    %s398 = scalar_lea.sflag [#allocation4], 1
    %399 = vsyncpa %s398, 1

</llo_original>
